<compile_context>
chip_gen: v6e
topology: v6e:2x2x1
jax: 0.10.0
libtpu: 0.0.40
codegen_flags: <defaults>
</compile_context>

<pallas_src>
import functools

import jax
import jax.numpy as jnp
from jax.experimental import pallas as pl
from jax.experimental.pallas import tpu as pltpu


COMPUTE_DTYPE = jnp.bfloat16  # MXU operand dtype (accumulation is always f32)


# ----------------------------- Pallas kernels -------------------------------

def fused_kernel(adj_ref, x_ref, w1_ref, b1_ref, w2_ref, b2_ref, o_ref,
                 hp_ref, *, K):
    """Whole forward in one kernel: A_hat resident, Hp in VMEM scratch."""
    # projection (reassociated: (A^K X) W1 == A^K (X W1), exact since linear)
    hp_ref[...] = jnp.dot(
        x_ref[...], w1_ref[...], preferred_element_type=jnp.float32
    ).astype(hp_ref.dtype)
    # first K-1 propagations; Hp never leaves VMEM
    for _ in range(K - 1):
        hp_ref[...] = jnp.dot(
            adj_ref[...], hp_ref[...], preferred_element_type=jnp.float32
        ).astype(hp_ref.dtype)
    # last propagation fused with the MLP head
    # TODO(synk): MLP class source not provided; assumed Linear/ReLU/Linear
    #             (dropout / batchnorm are identity at inference).
    h = jnp.dot(adj_ref[...], hp_ref[...], preferred_element_type=jnp.float32)
    h = jnp.maximum(h + b1_ref[...], 0.0)
    out = jnp.dot(
        h.astype(w2_ref.dtype), w2_ref[...], preferred_element_type=jnp.float32
    ) + b2_ref[...]
    o_ref[...] = out.astype(o_ref.dtype)


def project_kernel(x_ref, w1_ref, o_ref):
    # Hp[row_tile] = X[row_tile] @ W1p
    o_ref[...] = jnp.dot(
        x_ref[...], w1_ref[...], preferred_element_type=jnp.float32
    ).astype(o_ref.dtype)


def propagate_kernel(adj_ref, h_ref, o_ref, acc_ref):
    # H_out[row_tile] = sum_k A_hat[row_tile, col_tile_k] @ H_in[col_tile_k]
    k = pl.program_id(1)

    @pl.when(k == 0)
    def _():
        acc_ref[...] = jnp.zeros_like(acc_ref)

    acc_ref[...] += jnp.dot(
        adj_ref[...], h_ref[...], preferred_element_type=jnp.float32
    )

    @pl.when(k == pl.num_programs(1) - 1)
    def _():
        o_ref[...] = acc_ref[...].astype(o_ref.dtype)


def head_kernel(adj_ref, h_ref, b1_ref, w2_ref, b2_ref, o_ref, acc_ref):
    # Fused: last propagation (column-reduced) + bias + relu + second linear.
    k = pl.program_id(1)

    @pl.when(k == 0)
    def _():
        acc_ref[...] = jnp.zeros_like(acc_ref)

    acc_ref[...] += jnp.dot(
        adj_ref[...], h_ref[...], preferred_element_type=jnp.float32
    )

    @pl.when(k == pl.num_programs(1) - 1)
    def _():
        h = jnp.maximum(acc_ref[...] + b1_ref[...], 0.0)
        out = jnp.dot(
            h.astype(w2_ref.dtype), w2_ref[...],
            preferred_element_type=jnp.float32,
        ) + b2_ref[...]
        o_ref[...] = out.astype(o_ref.dtype)


# ------------------------------- wrapper -------------------------------------

def _round_up(x, m):
    return (x + m - 1) // m * m


def _choose_tile(n, want, min_tiles):
    """Largest multiple-of-16 divisor of n that is <= want and keeps >= min_tiles."""
    best = None
    t = 16
    while t <= min(want, n):
        if n % t == 0 and n // t >= min_tiles:
            best = t
        t += 16
    if best is None:  # relax the min_tiles requirement
        t = 16
        while t <= n:
            if n % t == 0:
                best = t
            t += 16
    assert best is not None, "N must be a multiple of 16"
    return best


@functools.partial(
    jax.jit,
    static_argnames=("K", "tile_m", "tile_k", "fused_vmem_budget", "force_tiled"),
)
def sgc_forward(adj, x, w1, b1, w2, b2, *, K, tile_m=256, tile_k=256,
                fused_vmem_budget=40 * 1024 * 1024, force_tiled=False):
    assert K >= 1
    N, F = x.shape
    HID = w1.shape[-1]
    C = w2.shape[-1]
    HP = _round_up(HID, 128)   # lane-dense hidden width
    CP = _round_up(C, 128)     # lane-dense class width (unmasked output stores)

    cdt = COMPUTE_DTYPE
    # bf16 cast hoisted: callers should pre-cast A_hat once; only cast if needed.
    adj_c = adj if adj.dtype == cdt else adj.astype(cdt)
    x_c = x.astype(cdt)
    w1p = jnp.zeros((F, HP), cdt).at[:, :HID].set(w1.astype(cdt))
    b1p = jnp.zeros((1, HP), jnp.float32).at[:, :HID].set(
        b1.reshape(1, -1).astype(jnp.float32))
    w2p = jnp.zeros((HP, CP), cdt).at[:HID, :C].set(w2.astype(cdt))
    b2p = jnp.zeros((1, CP), jnp.float32).at[:, :C].set(
        b2.reshape(1, -1).astype(jnp.float32))

    # ---------------- fused single-call path (A_hat fits VMEM) ----------------
    fused_bytes = (
        2 * 2 * (N * N + N * F + F * HP + HP * CP + HP + CP)  # double-buffered inputs
        + 2 * 4 * (N * CP)                                    # double-buffered f32 out
        + 2 * N * HP                                          # Hp scratch (bf16)
        + (1 << 20)                                           # headroom
    )
    use_fused = (not force_tiled) and fused_bytes <= fused_vmem_budget

    if use_fused:
        def full(shape):
            nd = len(shape)
            return pl.BlockSpec(shape, lambda i, _nd=nd: (0,) * _nd)

        vmem_limit = int(min(max(fused_bytes, 32 << 20), 48 << 20))
        out_p = pl.pallas_call(
            functools.partial(fused_kernel, K=K),
            out_shape=jax.ShapeDtypeStruct((N, CP), jnp.float32),
            grid=(1,),
            in_specs=[full((N, N)), full((N, F)), full((F, HP)),
                      full((1, HP)), full((HP, CP)), full((1, CP))],
            out_specs=full((N, CP)),
            scratch_shapes=[pltpu.VMEM((N, HP), cdt)],
            compiler_params=pltpu.CompilerParams(
                dimension_semantics=("arbitrary",),
                vmem_limit_bytes=vmem_limit),
        )(adj_c, x_c, w1p, b1p, w2p, b2p)
        # layout plumbing: slice real class columns off the lane-dense slab
        return out_p[:, :C].astype(x.dtype)

    # ---------------- tiled fallback path (large N) ---------------------------
    assert N % 16 == 0, "N must be a multiple of 16 for the tiled path"
    tm = _choose_tile(N, tile_m, min_tiles=2)   # >=2 row tiles -> both v7x TCs
    tk = _choose_tile(N, tile_k, min_tiles=1)
    n_m, n_k = N // tm, N // tk

    est = (2 * (tm * tk * 2 + tk * HP * 2 + HP * CP * 2 + tm * CP * 4
                + (HP + CP) * 4)
           + tm * HP * 4 + (2 << 20))
    vmem_limit = int(min(max(est, 32 << 20), 48 << 20))
    params_1d = pltpu.CompilerParams(
        dimension_semantics=("parallel",), vmem_limit_bytes=vmem_limit)
    params_2d = pltpu.CompilerParams(
        dimension_semantics=("parallel", "arbitrary"),
        vmem_limit_bytes=vmem_limit)

    # 1) projection: Hp = X @ W1p
    hp = pl.pallas_call(
        project_kernel,
        out_shape=jax.ShapeDtypeStruct((N, HP), cdt),
        grid=(n_m,),
        in_specs=[pl.BlockSpec((tm, F), lambda i: (i, 0)),
                  pl.BlockSpec((F, HP), lambda i: (0, 0))],
        out_specs=pl.BlockSpec((tm, HP), lambda i: (i, 0)),
        compiler_params=params_1d,
    )(x_c, w1p)

    # 2) first K-1 propagations: Hp <- A_hat @ Hp (row x column tiled, f32 acc)
    prop = pl.pallas_call(
        propagate_kernel,
        out_shape=jax.ShapeDtypeStruct((N, HP), cdt),
        grid=(n_m, n_k),
        in_specs=[pl.BlockSpec((tm, tk), lambda i, k: (i, k)),
                  pl.BlockSpec((tk, HP), lambda i, k: (k, 0))],
        out_specs=pl.BlockSpec((tm, HP), lambda i, k: (i, 0)),
        scratch_shapes=[pltpu.VMEM((tm, HP), jnp.float32)],
        compiler_params=params_2d,
    )
    for _ in range(K - 1):
        hp = prop(adj_c, hp)

    # 3) last propagation fused with the MLP head; lane-dense (N, CP) output.
    out_p = pl.pallas_call(
        head_kernel,
        out_shape=jax.ShapeDtypeStruct((N, CP), jnp.float32),
        grid=(n_m, n_k),
        in_specs=[pl.BlockSpec((tm, tk), lambda i, k: (i, k)),
                  pl.BlockSpec((tk, HP), lambda i, k: (k, 0)),
                  pl.BlockSpec((1, HP), lambda i, k: (0, 0)),
                  pl.BlockSpec((HP, CP), lambda i, k: (0, 0)),
                  pl.BlockSpec((1, CP), lambda i, k: (0, 0))],
        out_specs=pl.BlockSpec((tm, CP), lambda i, k: (i, 0)),
        scratch_shapes=[pltpu.VMEM((tm, HP), jnp.float32)],
        compiler_params=params_2d,
    )(adj_c, hp, b1p, w2p, b2p)

    return out_p[:, :C].astype(x.dtype)


# ------------------------------- JAX glue -----------------------------------

def gcn_norm_dense(edge_index, num_nodes, dtype=jnp.float32):
    """Dense equivalent of torch_geometric gcn_norm + to_torch_coo_tensor."""
    row, col = edge_index[0], edge_index[1]
    a = jnp.zeros((num_nodes, num_nodes), dtype).at[row, col].add(1.0)
    a = a + jnp.eye(num_nodes, dtype=dtype)          # add self loops (fill 1.0)
    deg = a.sum(axis=0)                              # source_to_target flow
    dinv = jnp.where(deg > 0.0, jax.lax.rsqrt(deg), 0.0)
    return dinv[:, None] * a * dinv[None, :]         # D^-1/2 (A+I) D^-1/2


def init_linear(key, fan_in, fan_out, dtype=jnp.float32):
    """PyTorch nn.Linear default init: U(-1/sqrt(fan_in), 1/sqrt(fan_in))."""
    kw, kb = jax.random.split(key)
    bound = 1.0 / jnp.sqrt(jnp.asarray(fan_in, dtype))
    w = jax.random.uniform(kw, (fan_in, fan_out), dtype, -bound, bound)
    b = jax.random.uniform(kb, (1, fan_out), dtype, -bound, bound)
    return w, b


def reference_forward(adj, x, w1, b1, w2, b2, K):
    h = x
    for _ in range(K):
        h = adj @ h
    h = jnp.maximum(h @ w1 + b1, 0.0)
    return h @ w2 + b2


def make_ring_graph(n):
    """Deterministic symmetric ring graph i <-> (i+1) mod n."""
    src = jnp.arange(n, dtype=jnp.int32)
    dst = (src + 1) % n
    return jnp.stack(
        [jnp.concatenate([src, dst]), jnp.concatenate([dst, src])], axis=0)


# --------------------------------- main --------------------------------------

if __name__ == "__main__":
    # args: K=2, num_layers=2, num_feat=32, hidden_dimension=64, num_class=8
    F, HID, C, K = 32, 64, 8, 2

    key = jax.random.PRNGKey(0)
    kx, kw1, kw2, kx2 = jax.random.split(key, 4)

    # MLP parameters: [num_feat -> hidden_dimension -> num_class]
    w1, b1 = init_linear(kw1, F, HID)
    w2, b2 = init_linear(kw2, HID, C)

    # ---- small graph: fused single-kernel path -----------------------------
    N = 128
    x = jax.random.normal(kx, (N, F), jnp.float32)
    adj = gcn_norm_dense(make_ring_graph(N), N, dtype=x.dtype)
    adj_bf16 = adj.astype(COMPUTE_DTYPE)             # cast hoisted out of forward

    out = sgc_forward(adj_bf16, x, w1, b1, w2, b2, K=K)
    out = jax.block_until_ready(out)
    ref = reference_forward(adj, x, w1, b1, w2, b2, K)
    assert out.shape == (N, C)
    # bf16 MXU operands (f32 accumulation) -> loosened tolerance vs f32 ref.
    assert jnp.allclose(out, ref, atol=5e-2, rtol=5e-2)

    # ---- larger graph: tiled fallback path (row x column reduction grid) ----
    N2 = 512
    x2 = jax.random.normal(kx2, (N2, F), jnp.float32)
    adj2 = gcn_norm_dense(make_ring_graph(N2), N2, dtype=x2.dtype)
    adj2_bf16 = adj2.astype(COMPUTE_DTYPE)

    out2 = sgc_forward(adj2_bf16, x2, w1, b1, w2, b2, K=K,
                       tile_m=256, tile_k=256, force_tiled=True)
    out2 = jax.block_until_ready(out2)
    ref2 = reference_forward(adj2, x2, w1, b1, w2, b2, K)
    assert out2.shape == (N2, C)
    assert jnp.allclose(out2, ref2, atol=7.5e-2, rtol=7.5e-2)

    print("KERNEL_OK")
</pallas_src>

<mosaic_0001>
module attributes {stable_mosaic.version = 11 : i64} {
  func.func @fused_kernel(%arg0: i32, %arg1: memref<128x128xbf16, #tpu.memory_space<vmem>>, %arg2: memref<128x32xbf16, #tpu.memory_space<vmem>>, %arg3: memref<32x128xbf16, #tpu.memory_space<vmem>>, %arg4: memref<1x128xf32, #tpu.memory_space<vmem>>, %arg5: memref<128x128xbf16, #tpu.memory_space<vmem>>, %arg6: memref<1x128xf32, #tpu.memory_space<vmem>>, %arg7: memref<128x128xf32, #tpu.memory_space<vmem>>, %arg8: memref<128x128xbf16, #tpu.memory_space<vmem>>) attributes {dimension_semantics = [#tpu.dimension_semantics<arbitrary>], iteration_bounds = array<i64: 1>, scalar_prefetch = 0 : i64, scratch_operands = 1 : i64, tpu.core_type = #tpu.core_type<tc>, window_params = [{pipeline_mode = #tpu.pipeline_mode<synchronous>, transform_indices = @transform_0, window_bounds = array<i64: 128, 128>}, {pipeline_mode = #tpu.pipeline_mode<synchronous>, transform_indices = @transform_1, window_bounds = array<i64: 128, 32>}, {pipeline_mode = #tpu.pipeline_mode<synchronous>, transform_indices = @transform_2, window_bounds = array<i64: 32, 128>}, {pipeline_mode = #tpu.pipeline_mode<synchronous>, transform_indices = @transform_3, window_bounds = array<i64: 1, 128>}, {pipeline_mode = #tpu.pipeline_mode<synchronous>, transform_indices = @transform_4, window_bounds = array<i64: 128, 128>}, {pipeline_mode = #tpu.pipeline_mode<synchronous>, transform_indices = @transform_5, window_bounds = array<i64: 1, 128>}, {pipeline_mode = #tpu.pipeline_mode<synchronous>, transform_indices = @transform_6, window_bounds = array<i64: 128, 128>}]} {
    %c0 = arith.constant 0 : index
    %c0_0 = arith.constant 0 : index
    %0 = vector.load %arg2[%c0, %c0_0] : memref<128x32xbf16, #tpu.memory_space<vmem>>, vector<128x32xbf16>
    %c0_1 = arith.constant 0 : index
    %c0_2 = arith.constant 0 : index
    %1 = vector.load %arg3[%c0_1, %c0_2] : memref<32x128xbf16, #tpu.memory_space<vmem>>, vector<32x128xbf16>
    %cst = arith.constant dense<0.000000e+00> : vector<128x128xf32>
    %2 = tpu.matmul %0, %1, %cst {dimension_numbers = #tpu.dot_dimension_numbers<[1], [0], [0], [1], [0, 0, 1, 1], [], []>} : vector<128x32xbf16>, vector<32x128xbf16>, vector<128x128xf32> -> vector<128x128xf32>
    %3 = arith.truncf %2 : vector<128x128xf32> to vector<128x128xbf16>
    %c0_3 = arith.constant 0 : index
    %c0_4 = arith.constant 0 : index
    %4 = vector.load %arg8[%c0_3, %c0_4] : memref<128x128xbf16, #tpu.memory_space<vmem>>, vector<128x128xbf16>
    tpu.vector_store %arg8[%c0_3, %c0_4], %3 {strides = array<i32>} : memref<128x128xbf16, #tpu.memory_space<vmem>>, vector<128x128xbf16>,
    %c0_5 = arith.constant 0 : index
    %c0_6 = arith.constant 0 : index
    %5 = vector.load %arg1[%c0_5, %c0_6] : memref<128x128xbf16, #tpu.memory_space<vmem>>, vector<128x128xbf16>
    %c0_7 = arith.constant 0 : index
    %c0_8 = arith.constant 0 : index
    %6 = vector.load %arg8[%c0_7, %c0_8] : memref<128x128xbf16, #tpu.memory_space<vmem>>, vector<128x128xbf16>
    %cst_9 = arith.constant dense<0.000000e+00> : vector<128x128xf32>
    %7 = tpu.matmul %5, %6, %cst_9 {dimension_numbers = #tpu.dot_dimension_numbers<[1], [0], [0], [1], [0, 0, 1, 1], [], []>} : vector<128x128xbf16>, vector<128x128xbf16>, vector<128x128xf32> -> vector<128x128xf32>
    %8 = arith.truncf %7 : vector<128x128xf32> to vector<128x128xbf16>
    %c0_10 = arith.constant 0 : index
    %c0_11 = arith.constant 0 : index
    %9 = vector.load %arg8[%c0_10, %c0_11] : memref<128x128xbf16, #tpu.memory_space<vmem>>, vector<128x128xbf16>
    tpu.vector_store %arg8[%c0_10, %c0_11], %8 {strides = array<i32>} : memref<128x128xbf16, #tpu.memory_space<vmem>>, vector<128x128xbf16>,
    %c0_12 = arith.constant 0 : index
    %c0_13 = arith.constant 0 : index
    %10 = vector.load %arg1[%c0_12, %c0_13] : memref<128x128xbf16, #tpu.memory_space<vmem>>, vector<128x128xbf16>
    %c0_14 = arith.constant 0 : index
    %c0_15 = arith.constant 0 : index
    %11 = vector.load %arg8[%c0_14, %c0_15] : memref<128x128xbf16, #tpu.memory_space<vmem>>, vector<128x128xbf16>
    %cst_16 = arith.constant dense<0.000000e+00> : vector<128x128xf32>
    %12 = tpu.matmul %10, %11, %cst_16 {dimension_numbers = #tpu.dot_dimension_numbers<[1], [0], [0], [1], [0, 0, 1, 1], [], []>} : vector<128x128xbf16>, vector<128x128xbf16>, vector<128x128xf32> -> vector<128x128xf32>
    %c0_17 = arith.constant 0 : index
    %c0_18 = arith.constant 0 : index
    %13 = vector.load %arg4[%c0_17, %c0_18] : memref<1x128xf32, #tpu.memory_space<vmem>>, vector<1x128xf32>
    %14 = vector.broadcast %13 : vector<1x128xf32> to vector<128x128xf32>
    %15 = arith.addf %12, %14 : vector<128x128xf32>
    %cst_19 = arith.constant 0.000000e+00 : f32
    %16 = vector.broadcast %cst_19 : f32 to vector<128x128xf32>
    %17 = arith.maximumf %15, %16 : vector<128x128xf32>
    %18 = arith.truncf %17 : vector<128x128xf32> to vector<128x128xbf16>
    %c0_20 = arith.constant 0 : index
    %c0_21 = arith.constant 0 : index
    %19 = vector.load %arg5[%c0_20, %c0_21] : memref<128x128xbf16, #tpu.memory_space<vmem>>, vector<128x128xbf16>
    %cst_22 = arith.constant dense<0.000000e+00> : vector<128x128xf32>
    %20 = tpu.matmul %18, %19, %cst_22 {dimension_numbers = #tpu.dot_dimension_numbers<[1], [0], [0], [1], [0, 0, 1, 1], [], []>} : vector<128x128xbf16>, vector<128x128xbf16>, vector<128x128xf32> -> vector<128x128xf32>
    %c0_23 = arith.constant 0 : index
    %c0_24 = arith.constant 0 : index
    %21 = vector.load %arg6[%c0_23, %c0_24] : memref<1x128xf32, #tpu.memory_space<vmem>>, vector<1x128xf32>
    %22 = vector.broadcast %21 : vector<1x128xf32> to vector<128x128xf32>
    %23 = arith.addf %20, %22 : vector<128x128xf32>
    %c0_25 = arith.constant 0 : index
    %c0_26 = arith.constant 0 : index
    %24 = vector.load %arg7[%c0_25, %c0_26] : memref<128x128xf32, #tpu.memory_space<vmem>>, vector<128x128xf32>
    tpu.vector_store %arg7[%c0_25, %c0_26], %23 {strides = array<i32>} : memref<128x128xf32, #tpu.memory_space<vmem>>, vector<128x128xf32>,
    return
  }
  func.func @transform_0(%arg0: i32) -> (i32, i32) {
    %c0_i32 = arith.constant 0 : i32
    %c0_i32_0 = arith.constant 0 : i32
    %c0_i32_1 = arith.constant 0 : i32
    return %c0_i32, %c0_i32_0 : i32, i32
  }
  func.func @transform_1(%arg0: i32) -> (i32, i32) {
    %c0_i32 = arith.constant 0 : i32
    %c0_i32_0 = arith.constant 0 : i32
    %c0_i32_1 = arith.constant 0 : i32
    return %c0_i32, %c0_i32_0 : i32, i32
  }
  func.func @transform_2(%arg0: i32) -> (i32, i32) {
    %c0_i32 = arith.constant 0 : i32
    %c0_i32_0 = arith.constant 0 : i32
    %c0_i32_1 = arith.constant 0 : i32
    return %c0_i32, %c0_i32_0 : i32, i32
  }
  func.func @transform_3(%arg0: i32) -> (i32, i32) {
    %c0_i32 = arith.constant 0 : i32
    %c0_i32_0 = arith.constant 0 : i32
    %c0_i32_1 = arith.constant 0 : i32
    return %c0_i32, %c0_i32_0 : i32, i32
  }
  func.func @transform_4(%arg0: i32) -> (i32, i32) {
    %c0_i32 = arith.constant 0 : i32
    %c0_i32_0 = arith.constant 0 : i32
    %c0_i32_1 = arith.constant 0 : i32
    return %c0_i32, %c0_i32_0 : i32, i32
  }
  func.func @transform_5(%arg0: i32) -> (i32, i32) {
    %c0_i32 = arith.constant 0 : i32
    %c0_i32_0 = arith.constant 0 : i32
    %c0_i32_1 = arith.constant 0 : i32
    return %c0_i32, %c0_i32_0 : i32, i32
  }
  func.func @transform_6(%arg0: i32) -> (i32, i32) {
    %c0_i32 = arith.constant 0 : i32
    %c0_i32_0 = arith.constant 0 : i32
    %c0_i32_1 = arith.constant 0 : i32
    return %c0_i32, %c0_i32_0 : i32, i32
  }
}

</mosaic_0001>

<llo_original>
// kernel: sgc_forward.1
$region0: #{sgc_forward.1}
  #allocation0 [shape = 'u32[]', space=smem, size = 0x4, offset = 0x4, fixed_abs, tag = 'smem constant byte address 0x4 - core index']
  #allocation1 [shape = 'u32[144,128]{1,0:T(1,128)}', space=vmem, size = 0x12000, scoped, tag = 'internal scratch']
  #allocation2 [shape = 'bf16[128,128]{1,0:T(8,128)(2,1)}', space=vmem, size = 0x8000, scoped, tag = 'scratch operand']
  %s0 = inlined_call_operand.vmem [shape: bf16[128,128], index: 0, kind: input, shape index: {}]
  %s1 = inlined_call_operand.vmem [shape: bf16[128,32], index: 1, kind: input, shape index: {}]
  %s2 = inlined_call_operand.vmem [shape: bf16[32,128], index: 2, kind: input, shape index: {}]
  %s3 = inlined_call_operand.vmem [shape: f32[1,128], index: 3, kind: input, shape index: {}]
  %s4 = inlined_call_operand.vmem [shape: bf16[128,128], index: 4, kind: input, shape index: {}]
  %s5 = inlined_call_operand.vmem [shape: f32[1,128], index: 5, kind: input, shape index: {}]
  %s6 = inlined_call_operand.vmem [shape: f32[128,128], index: 6, kind: output, shape index: {}]
  %s7 = sld [smem:[#allocation0]]
  $region34: #{sgc_forward.1} parent=0
    _
  %s9 = ssub.s32 1, %s7
  %s10 = scalar_select 0, %s9, %s7
  // Predicated region
  $region2: #{sgc_forward.1} parent=0 // pred_check
    _
  $region3: #{sgc_forward.1} parent=0 // pred_check_branch
    %12 = sbr.rel (0) target = $region5
  $region4: #{sgc_forward.1} parent=0 // pred_region
    _
  $region5: #{sgc_forward.1} parent=0 // pred_fallthru
    _
  // Predicated region
  $region6: #{sgc_forward.1} parent=0 // pred_check
    _
  $region7: #{sgc_forward.1} parent=0 // pred_check_branch
    %14 = sbr.rel (0) target = $region9
  $region8: #{sgc_forward.1} parent=0 // pred_region
    _
  $region9: #{sgc_forward.1} parent=0 // pred_fallthru
    _
  // Predicated region
  $region10: #{sgc_forward.1} parent=0 // pred_check
    _
  $region11: #{sgc_forward.1} parent=0 // pred_check_branch
    %16 = sbr.rel (0) target = $region13
  $region12: #{sgc_forward.1} parent=0 // pred_region
    _
  $region13: #{sgc_forward.1} parent=0 // pred_fallthru
    _
  // Predicated region
  $region14: #{sgc_forward.1} parent=0 // pred_check
    _
  $region15: #{sgc_forward.1} parent=0 // pred_check_branch
    %18 = sbr.rel (0) target = $region17
  $region16: #{sgc_forward.1} parent=0 // pred_region
    _
  $region17: #{sgc_forward.1} parent=0 // pred_fallthru
    _
  // Predicated region
  $region18: #{sgc_forward.1} parent=0 // pred_check
    _
  $region19: #{sgc_forward.1} parent=0 // pred_check_branch
    %20 = sbr.rel (0) target = $region21
  $region20: #{sgc_forward.1} parent=0 // pred_region
    _
  $region21: #{sgc_forward.1} parent=0 // pred_fallthru
    _
  // Predicated region
  $region22: #{sgc_forward.1} parent=0 // pred_check
    _
  $region23: #{sgc_forward.1} parent=0 // pred_check_branch
    %22 = sbr.rel (0) target = $region25
  $region24: #{sgc_forward.1} parent=0 // pred_region
    _
  $region25: #{sgc_forward.1} parent=0 // pred_fallthru
    _
  %v24 = vld [vmem:[%s1] sm:$0xf]
  %v25 = vld [vmem:[%s1 + $0x4] sm:$0xf]
  %v26 = vld [vmem:[%s1 + $0x8] sm:$0xf]
  %v27 = vld [vmem:[%s1 + $0xc] sm:$0xf]
  %v28 = vld [vmem:[%s1 + $0x10] sm:$0xf]
  %v29 = vld [vmem:[%s1 + $0x14] sm:$0xf]
  %v30 = vld [vmem:[%s1 + $0x18] sm:$0xf]
  %v31 = vld [vmem:[%s1 + $0x1c] sm:$0xf]
  %v32 = vld [vmem:[%s1 + $0x20] sm:$0xf]
  %v33 = vld [vmem:[%s1 + $0x24] sm:$0xf]
  %v34 = vld [vmem:[%s1 + $0x28] sm:$0xf]
  %v35 = vld [vmem:[%s1 + $0x2c] sm:$0xf]
  %v36 = vld [vmem:[%s1 + $0x30] sm:$0xf]
  %v37 = vld [vmem:[%s1 + $0x34] sm:$0xf]
  %v38 = vld [vmem:[%s1 + $0x38] sm:$0xf]
  %v39 = vld [vmem:[%s1 + $0x3c] sm:$0xf]
  %v40 = vld [vmem:[%s2] sm:$0xf]
  %v41 = vld [vmem:[%s2 + $0x4] sm:$0xf]
  %v42 = vld [vmem:[%s2 + $0x8] sm:$0xf]
  %v43 = vld [vmem:[%s2 + $0xc] sm:$0xf]
  %v60 = vunpack.c.l.b16 %v24
  %v61 = vunpack.c.l.b16 %v25
  %v62 = vunpack.c.l.b16 %v26
  %v63 = vunpack.c.l.b16 %v27
  %v64 = vunpack.c.l.b16 %v28
  %v65 = vunpack.c.l.b16 %v29
  %v66 = vunpack.c.l.b16 %v30
  %v67 = vunpack.c.l.b16 %v31
  %v68 = vunpack.c.l.b16 %v32
  %v69 = vunpack.c.l.b16 %v33
  %v70 = vunpack.c.l.b16 %v34
  %v71 = vunpack.c.l.b16 %v35
  %v72 = vunpack.c.l.b16 %v36
  %v73 = vunpack.c.l.b16 %v37
  %v74 = vunpack.c.l.b16 %v38
  %v75 = vunpack.c.l.b16 %v39
  %v76 = vpack.c.b16 %v61, %v60
  %v77 = vpack.c.b16 %v63, %v62
  %v78 = vpack.c.b16 %v65, %v64
  %v79 = vpack.c.b16 %v67, %v66
  %v80 = vpack.c.b16 %v69, %v68
  %v81 = vpack.c.b16 %v71, %v70
  %v82 = vpack.c.b16 %v73, %v72
  %v83 = vpack.c.b16 %v75, %v74
  %v88 = vunpack.c.l.b16 %v40
  %v89 = vunpack.c.l.b16 %v41
  %v90 = vunpack.c.l.b16 %v42
  %v91 = vunpack.c.l.b16 %v43
  %v92 = vpack.c.b16 %v89, %v88
  %v93 = vpack.c.b16 %v91, %v90
  %vm96 = vcmask 261120
  %v98 = vsel %vm96, %v76, 0
  %v101 = vsel %vm96, %v77, 0
  %v104 = vsel %vm96, %v78, 0
  %v107 = vsel %vm96, %v79, 0
  %v110 = vsel %vm96, %v80, 0
  %v113 = vsel %vm96, %v81, 0
  %v116 = vsel %vm96, %v82, 0
  %v119 = vsel %vm96, %v83, 0
  %121 = vmatprep.subr.bf16.mxu0 0
  %122 = vmatpush1.bf16.msra.mxu0 0
  %123 = vmatprep.subr.bf16.mxu0 0
  %124 = vmatpush1.bf16.msra.mxu0 0
  %125 = vmatprep.subr.bf16.mxu0 0
  %126 = vmatpush1.bf16.msra.mxu0 0
  %127 = vmatprep.subr.bf16.mxu0 0
  %128 = vmatpush1.bf16.msra.mxu0 0
  %129 = vmatprep.subr.bf16.mxu0 0
  %130 = vmatpush1.bf16.msra.mxu0 0
  %131 = vmatprep.subr.bf16.mxu0 0
  %132 = vmatpush1.bf16.msra.mxu0 0
  %133 = vmatprep.subr.bf16.mxu0 0
  %134 = vmatpush1.bf16.msra.mxu0 %v93
  %135 = vmatprep.subr.bf16.mxu0 0
  %136 = vmatpush1.bf16.msra.mxu0 %v92
  %137 = vmatprep.subr.bf16.mxu0 0
  %138 = vmatpush2.bf16.msra.mxu0 0
  %139 = vmatprep.subr.bf16.mxu0 0
  %140 = vmatpush2.bf16.msra.mxu0 0
  %141 = vmatprep.subr.bf16.mxu0 0
  %142 = vmatpush2.bf16.msra.mxu0 0
  %143 = vmatprep.subr.bf16.mxu0 0
  %144 = vmatpush2.bf16.msra.mxu0 0
  %145 = vmatprep.subr.bf16.mxu0 0
  %146 = vmatpush2.bf16.msra.mxu0 0
  %147 = vmatprep.subr.bf16.mxu0 0
  %148 = vmatpush2.bf16.msra.mxu0 0
  %149 = vmatprep.subr.bf16.mxu0 0
  %150 = vmatpush2.bf16.msra.mxu0 0
  %151 = vmatprep.subr.bf16.mxu0 0
  %152 = vmatpush2.bf16.msra.mxu0 0
  %153 = vmatprep.mubr.bf16.mxu0 0
  %154 = vmatmul.mubr.bf16.gmra.mxu0 %v98
  %v155 = vpop.f32.mrf.mxu0
  %v156 = vadd.f32 0.0, %v155
  %v157 = vpop.f32.mrf.mxu0
  %v158 = vpop.f32.mrf.mxu0
  %v159 = vadd.f32 0.0, %v158
  %v160 = vpop.f32.mrf.mxu0
  %161 = vmatprep.mubr.bf16.mxu0 0
  %162 = vmatmul.mubr.bf16.gmra.mxu0 %v101
  %v163 = vpop.f32.mrf.mxu0
  %v164 = vadd.f32 0.0, %v163
  %v165 = vpop.f32.mrf.mxu0
  %v166 = vpop.f32.mrf.mxu0
  %v167 = vadd.f32 0.0, %v166
  %v168 = vpop.f32.mrf.mxu0
  %169 = vmatprep.mubr.bf16.mxu0 0
  %170 = vmatmul.mubr.bf16.gmra.mxu0 %v104
  %v171 = vpop.f32.mrf.mxu0
  %v172 = vadd.f32 0.0, %v171
  %v173 = vpop.f32.mrf.mxu0
  %v174 = vpop.f32.mrf.mxu0
  %v175 = vadd.f32 0.0, %v174
  %v176 = vpop.f32.mrf.mxu0
  %177 = vmatprep.mubr.bf16.mxu0 0
  %178 = vmatmul.mubr.bf16.gmra.mxu0 %v107
  %v179 = vpop.f32.mrf.mxu0
  %v180 = vadd.f32 0.0, %v179
  %v181 = vpop.f32.mrf.mxu0
  %v182 = vpop.f32.mrf.mxu0
  %v183 = vadd.f32 0.0, %v182
  %v184 = vpop.f32.mrf.mxu0
  %185 = vmatprep.mubr.bf16.mxu0 0
  %186 = vmatmul.mubr.bf16.gmra.mxu0 %v110
  %v187 = vpop.f32.mrf.mxu0
  %v188 = vadd.f32 0.0, %v187
  %v189 = vpop.f32.mrf.mxu0
  %v190 = vpop.f32.mrf.mxu0
  %v191 = vadd.f32 0.0, %v190
  %v192 = vpop.f32.mrf.mxu0
  %193 = vmatprep.mubr.bf16.mxu0 0
  %194 = vmatmul.mubr.bf16.gmra.mxu0 %v113
  %v195 = vpop.f32.mrf.mxu0
  %v196 = vadd.f32 0.0, %v195
  %v197 = vpop.f32.mrf.mxu0
  %v198 = vpop.f32.mrf.mxu0
  %v199 = vadd.f32 0.0, %v198
  %v200 = vpop.f32.mrf.mxu0
  %201 = vmatprep.mubr.bf16.mxu0 0
  %202 = vmatmul.mubr.bf16.gmra.mxu0 %v116
  %v203 = vpop.f32.mrf.mxu0
  %v204 = vadd.f32 0.0, %v203
  %v205 = vpop.f32.mrf.mxu0
  %v206 = vpop.f32.mrf.mxu0
  %v207 = vadd.f32 0.0, %v206
  %v208 = vpop.f32.mrf.mxu0
  %209 = vmatprep.mubr.bf16.mxu0 0
  %210 = vmatmul.mubr.bf16.gmra.mxu0 %v119
  %v211 = vpop.f32.mrf.mxu0
  %v212 = vadd.f32 0.0, %v211
  %v213 = vpop.f32.mrf.mxu0
  %v214 = vpop.f32.mrf.mxu0
  %v215 = vadd.f32 0.0, %v214
  %v216 = vpop.f32.mrf.mxu0
  %217 = vdwg.mxu0
  %v218 = vpack.c.bf16 %v159, %v156
  %v219 = vpack.c.bf16 %v167, %v164
  %v220 = vpack.c.bf16 %v175, %v172
  %v221 = vpack.c.bf16 %v183, %v180
  %v222 = vpack.c.bf16 %v191, %v188
  %v223 = vpack.c.bf16 %v199, %v196
  %v224 = vpack.c.bf16 %v207, %v204
  %v225 = vpack.c.bf16 %v215, %v212
  %v234 = vunpack.c.l.b16 %v218
  %v235 = vunpack.c.h.b16 %v218
  %v236 = vunpack.c.l.b16 %v219
  %v237 = vunpack.c.h.b16 %v219
  %v238 = vunpack.c.l.b16 %v220
  %v239 = vunpack.c.h.b16 %v220
  %v240 = vunpack.c.l.b16 %v221
  %v241 = vunpack.c.h.b16 %v221
  %v242 = vunpack.c.l.b16 %v222
  %v243 = vunpack.c.h.b16 %v222
  %v244 = vunpack.c.l.b16 %v223
  %v245 = vunpack.c.h.b16 %v223
  %v246 = vunpack.c.l.b16 %v224
  %v247 = vunpack.c.h.b16 %v224
  %v248 = vunpack.c.l.b16 %v225
  %v249 = vunpack.c.h.b16 %v225
  %v250 = vpack.c.b16 %v234, %v234
  %v251 = vpack.c.b16 %v235, %v235
  %v252 = vpack.c.b16 %v236, %v236
  %v253 = vpack.c.b16 %v237, %v237
  %v254 = vpack.c.b16 %v238, %v238
  %v255 = vpack.c.b16 %v239, %v239
  %v256 = vpack.c.b16 %v240, %v240
  %v257 = vpack.c.b16 %v241, %v241
  %v258 = vpack.c.b16 %v242, %v242
  %v259 = vpack.c.b16 %v243, %v243
  %v260 = vpack.c.b16 %v244, %v244
  %v261 = vpack.c.b16 %v245, %v245
  %v262 = vpack.c.b16 %v246, %v246
  %v263 = vpack.c.b16 %v247, %v247
  %v264 = vpack.c.b16 %v248, %v248
  %v265 = vpack.c.b16 %v249, %v249
  %282 = vst [vmem:[#allocation2] sm:$0xf] %v250
  %283 = vst [vmem:[#allocation2 + $0x4] sm:$0xf] %v251
  %284 = vst [vmem:[#allocation2 + $0x8] sm:$0xf] %v252
  %285 = vst [vmem:[#allocation2 + $0xc] sm:$0xf] %v253
  %286 = vst [vmem:[#allocation2 + $0x10] sm:$0xf] %v254
  %287 = vst [vmem:[#allocation2 + $0x14] sm:$0xf] %v255
  %288 = vst [vmem:[#allocation2 + $0x18] sm:$0xf] %v256
  %289 = vst [vmem:[#allocation2 + $0x1c] sm:$0xf] %v257
  %290 = vst [vmem:[#allocation2 + $0x20] sm:$0xf] %v258
  %291 = vst [vmem:[#allocation2 + $0x24] sm:$0xf] %v259
  %292 = vst [vmem:[#allocation2 + $0x28] sm:$0xf] %v260
  %293 = vst [vmem:[#allocation2 + $0x2c] sm:$0xf] %v261
  %294 = vst [vmem:[#allocation2 + $0x30] sm:$0xf] %v262
  %295 = vst [vmem:[#allocation2 + $0x34] sm:$0xf] %v263
  %296 = vst [vmem:[#allocation2 + $0x38] sm:$0xf] %v264
  %297 = vst [vmem:[#allocation2 + $0x3c] sm:$0xf] %v265
  %v298 = vld [vmem:[%s0] sm:$0xf]
  %v299 = vld [vmem:[%s0 + $0x4] sm:$0xf]
  %v300 = vld [vmem:[%s0 + $0x8] sm:$0xf]
  %v301 = vld [vmem:[%s0 + $0xc] sm:$0xf]
  %v302 = vld [vmem:[%s0 + $0x10] sm:$0xf]
  %v303 = vld [vmem:[%s0 + $0x14] sm:$0xf]
  %v304 = vld [vmem:[%s0 + $0x18] sm:$0xf]
  %v305 = vld [vmem:[%s0 + $0x1c] sm:$0xf]
  %v306 = vld [vmem:[%s0 + $0x20] sm:$0xf]
  %v307 = vld [vmem:[%s0 + $0x24] sm:$0xf]
  %v308 = vld [vmem:[%s0 + $0x28] sm:$0xf]
  %v309 = vld [vmem:[%s0 + $0x2c] sm:$0xf]
  %v310 = vld [vmem:[%s0 + $0x30] sm:$0xf]
  %v311 = vld [vmem:[%s0 + $0x34] sm:$0xf]
  %v312 = vld [vmem:[%s0 + $0x38] sm:$0xf]
  %v313 = vld [vmem:[%s0 + $0x3c] sm:$0xf]
  %v314 = vld [vmem:[#allocation2] sm:$0xf]
  %v315 = vld [vmem:[#allocation2 + $0x4] sm:$0xf]
  %v316 = vld [vmem:[#allocation2 + $0x8] sm:$0xf]
  %v317 = vld [vmem:[#allocation2 + $0xc] sm:$0xf]
  %v318 = vld [vmem:[#allocation2 + $0x10] sm:$0xf]
  %v319 = vld [vmem:[#allocation2 + $0x14] sm:$0xf]
  %v320 = vld [vmem:[#allocation2 + $0x18] sm:$0xf]
  %v321 = vld [vmem:[#allocation2 + $0x1c] sm:$0xf]
  %v322 = vld [vmem:[#allocation2 + $0x20] sm:$0xf]
  %v323 = vld [vmem:[#allocation2 + $0x24] sm:$0xf]
  %v324 = vld [vmem:[#allocation2 + $0x28] sm:$0xf]
  %v325 = vld [vmem:[#allocation2 + $0x2c] sm:$0xf]
  %v326 = vld [vmem:[#allocation2 + $0x30] sm:$0xf]
  %v327 = vld [vmem:[#allocation2 + $0x34] sm:$0xf]
  %v328 = vld [vmem:[#allocation2 + $0x38] sm:$0xf]
  %v329 = vld [vmem:[#allocation2 + $0x3c] sm:$0xf]
  %v346 = vunpack.c.l.b16 %v298
  %v347 = vunpack.c.l.b16 %v299
  %v348 = vunpack.c.l.b16 %v300
  %v349 = vunpack.c.l.b16 %v301
  %v350 = vunpack.c.l.b16 %v302
  %v351 = vunpack.c.l.b16 %v303
  %v352 = vunpack.c.l.b16 %v304
  %v353 = vunpack.c.l.b16 %v305
  %v354 = vunpack.c.l.b16 %v306
  %v355 = vunpack.c.l.b16 %v307
  %v356 = vunpack.c.l.b16 %v308
  %v357 = vunpack.c.l.b16 %v309
  %v358 = vunpack.c.l.b16 %v310
  %v359 = vunpack.c.l.b16 %v311
  %v360 = vunpack.c.l.b16 %v312
  %v361 = vunpack.c.l.b16 %v313
  %v362 = vpack.c.b16 %v347, %v346
  %v363 = vpack.c.b16 %v349, %v348
  %v364 = vpack.c.b16 %v351, %v350
  %v365 = vpack.c.b16 %v353, %v352
  %v366 = vpack.c.b16 %v355, %v354
  %v367 = vpack.c.b16 %v357, %v356
  %v368 = vpack.c.b16 %v359, %v358
  %v369 = vpack.c.b16 %v361, %v360
  %v394 = vunpack.c.l.b16 %v314
  %v395 = vunpack.c.l.b16 %v315
  %v396 = vunpack.c.l.b16 %v316
  %v397 = vunpack.c.l.b16 %v317
  %v398 = vunpack.c.l.b16 %v318
  %v399 = vunpack.c.l.b16 %v319
  %v400 = vunpack.c.l.b16 %v320
  %v401 = vunpack.c.l.b16 %v321
  %v402 = vunpack.c.l.b16 %v322
  %v403 = vunpack.c.l.b16 %v323
  %v404 = vunpack.c.l.b16 %v324
  %v405 = vunpack.c.l.b16 %v325
  %v406 = vunpack.c.l.b16 %v326
  %v407 = vunpack.c.l.b16 %v327
  %v408 = vunpack.c.l.b16 %v328
  %v409 = vunpack.c.l.b16 %v329
  %v410 = vpack.c.b16 %v395, %v394
  %v411 = vpack.c.b16 %v397, %v396
  %v412 = vpack.c.b16 %v399, %v398
  %v413 = vpack.c.b16 %v401, %v400
  %v414 = vpack.c.b16 %v403, %v402
  %v415 = vpack.c.b16 %v405, %v404
  %v416 = vpack.c.b16 %v407, %v406
  %v417 = vpack.c.b16 %v409, %v408
  %426 = vmatprep.subr.bf16.mxu0 0
  %427 = vmatpush1.bf16.msra.mxu0 %v417
  %428 = vmatprep.subr.bf16.mxu0 0
  %429 = vmatpush1.bf16.msra.mxu0 %v416
  %430 = vmatprep.subr.bf16.mxu0 0
  %431 = vmatpush1.bf16.msra.mxu0 %v415
  %432 = vmatprep.subr.bf16.mxu0 0
  %433 = vmatpush1.bf16.msra.mxu0 %v414
  %434 = vmatprep.subr.bf16.mxu0 0
  %435 = vmatpush1.bf16.msra.mxu0 %v413
  %436 = vmatprep.subr.bf16.mxu0 0
  %437 = vmatpush1.bf16.msra.mxu0 %v412
  %438 = vmatprep.subr.bf16.mxu0 0
  %439 = vmatpush1.bf16.msra.mxu0 %v411
  %440 = vmatprep.subr.bf16.mxu0 0
  %441 = vmatpush1.bf16.msra.mxu0 %v410
  %442 = vmatprep.subr.bf16.mxu0 0
  %443 = vmatpush2.bf16.msra.mxu0 0
  %444 = vmatprep.subr.bf16.mxu0 0
  %445 = vmatpush2.bf16.msra.mxu0 0
  %446 = vmatprep.subr.bf16.mxu0 0
  %447 = vmatpush2.bf16.msra.mxu0 0
  %448 = vmatprep.subr.bf16.mxu0 0
  %449 = vmatpush2.bf16.msra.mxu0 0
  %450 = vmatprep.subr.bf16.mxu0 0
  %451 = vmatpush2.bf16.msra.mxu0 0
  %452 = vmatprep.subr.bf16.mxu0 0
  %453 = vmatpush2.bf16.msra.mxu0 0
  %454 = vmatprep.subr.bf16.mxu0 0
  %455 = vmatpush2.bf16.msra.mxu0 0
  %456 = vmatprep.subr.bf16.mxu0 0
  %457 = vmatpush2.bf16.msra.mxu0 0
  %458 = vmatprep.mubr.bf16.mxu0 0
  %459 = vmatmul.mubr.bf16.gmra.mxu0 %v362
  %v460 = vpop.f32.mrf.mxu0
  %v461 = vadd.f32 0.0, %v460
  %v462 = vpop.f32.mrf.mxu0
  %v463 = vpop.f32.mrf.mxu0
  %v464 = vadd.f32 0.0, %v463
  %v465 = vpop.f32.mrf.mxu0
  %466 = vmatprep.mubr.bf16.mxu0 0
  %467 = vmatmul.mubr.bf16.gmra.mxu0 %v363
  %v468 = vpop.f32.mrf.mxu0
  %v469 = vadd.f32 0.0, %v468
  %v470 = vpop.f32.mrf.mxu0
  %v471 = vpop.f32.mrf.mxu0
  %v472 = vadd.f32 0.0, %v471
  %v473 = vpop.f32.mrf.mxu0
  %474 = vmatprep.mubr.bf16.mxu0 0
  %475 = vmatmul.mubr.bf16.gmra.mxu0 %v364
  %v476 = vpop.f32.mrf.mxu0
  %v477 = vadd.f32 0.0, %v476
  %v478 = vpop.f32.mrf.mxu0
  %v479 = vpop.f32.mrf.mxu0
  %v480 = vadd.f32 0.0, %v479
  %v481 = vpop.f32.mrf.mxu0
  %482 = vmatprep.mubr.bf16.mxu0 0
  %483 = vmatmul.mubr.bf16.gmra.mxu0 %v365
  %v484 = vpop.f32.mrf.mxu0
  %v485 = vadd.f32 0.0, %v484
  %v486 = vpop.f32.mrf.mxu0
  %v487 = vpop.f32.mrf.mxu0
  %v488 = vadd.f32 0.0, %v487
  %v489 = vpop.f32.mrf.mxu0
  %490 = vmatprep.mubr.bf16.mxu0 0
  %491 = vmatmul.mubr.bf16.gmra.mxu0 %v366
  %v492 = vpop.f32.mrf.mxu0
  %v493 = vadd.f32 0.0, %v492
  %v494 = vpop.f32.mrf.mxu0
  %v495 = vpop.f32.mrf.mxu0
  %v496 = vadd.f32 0.0, %v495
  %v497 = vpop.f32.mrf.mxu0
  %498 = vmatprep.mubr.bf16.mxu0 0
  %499 = vmatmul.mubr.bf16.gmra.mxu0 %v367
  %v500 = vpop.f32.mrf.mxu0
  %v501 = vadd.f32 0.0, %v500
  %v502 = vpop.f32.mrf.mxu0
  %v503 = vpop.f32.mrf.mxu0
  %v504 = vadd.f32 0.0, %v503
  %v505 = vpop.f32.mrf.mxu0
  %506 = vmatprep.mubr.bf16.mxu0 0
  %507 = vmatmul.mubr.bf16.gmra.mxu0 %v368
  %v508 = vpop.f32.mrf.mxu0
  %v509 = vadd.f32 0.0, %v508
  %v510 = vpop.f32.mrf.mxu0
  %v511 = vpop.f32.mrf.mxu0
  %v512 = vadd.f32 0.0, %v511
  %v513 = vpop.f32.mrf.mxu0
  %514 = vmatprep.mubr.bf16.mxu0 0
  %515 = vmatmul.mubr.bf16.gmra.mxu0 %v369
  %v516 = vpop.f32.mrf.mxu0
  %v517 = vadd.f32 0.0, %v516
  %v518 = vpop.f32.mrf.mxu0
  %v519 = vpop.f32.mrf.mxu0
  %v520 = vadd.f32 0.0, %v519
  %v521 = vpop.f32.mrf.mxu0
  %522 = vdwg.mxu0
  %v523 = vpack.c.bf16 %v464, %v461
  %v524 = vpack.c.bf16 %v472, %v469
  %v525 = vpack.c.bf16 %v480, %v477
  %v526 = vpack.c.bf16 %v488, %v485
  %v527 = vpack.c.bf16 %v496, %v493
  %v528 = vpack.c.bf16 %v504, %v501
  %v529 = vpack.c.bf16 %v512, %v509
  %v530 = vpack.c.bf16 %v520, %v517
  %v539 = vunpack.c.l.b16 %v523
  %v540 = vunpack.c.h.b16 %v523
  %v541 = vunpack.c.l.b16 %v524
  %v542 = vunpack.c.h.b16 %v524
  %v543 = vunpack.c.l.b16 %v525
  %v544 = vunpack.c.h.b16 %v525
  %v545 = vunpack.c.l.b16 %v526
  %v546 = vunpack.c.h.b16 %v526
  %v547 = vunpack.c.l.b16 %v527
  %v548 = vunpack.c.h.b16 %v527
  %v549 = vunpack.c.l.b16 %v528
  %v550 = vunpack.c.h.b16 %v528
  %v551 = vunpack.c.l.b16 %v529
  %v552 = vunpack.c.h.b16 %v529
  %v553 = vunpack.c.l.b16 %v530
  %v554 = vunpack.c.h.b16 %v530
  %v555 = vpack.c.b16 %v539, %v539
  %v556 = vpack.c.b16 %v540, %v540
  %v557 = vpack.c.b16 %v541, %v541
  %v558 = vpack.c.b16 %v542, %v542
  %v559 = vpack.c.b16 %v543, %v543
  %v560 = vpack.c.b16 %v544, %v544
  %v561 = vpack.c.b16 %v545, %v545
  %v562 = vpack.c.b16 %v546, %v546
  %v563 = vpack.c.b16 %v547, %v547
  %v564 = vpack.c.b16 %v548, %v548
  %v565 = vpack.c.b16 %v549, %v549
  %v566 = vpack.c.b16 %v550, %v550
  %v567 = vpack.c.b16 %v551, %v551
  %v568 = vpack.c.b16 %v552, %v552
  %v569 = vpack.c.b16 %v553, %v553
  %v570 = vpack.c.b16 %v554, %v554
  %587 = vst [vmem:[#allocation2] sm:$0xf] %v555
  %588 = vst [vmem:[#allocation2 + $0x4] sm:$0xf] %v556
  %589 = vst [vmem:[#allocation2 + $0x8] sm:$0xf] %v557
  %590 = vst [vmem:[#allocation2 + $0xc] sm:$0xf] %v558
  %591 = vst [vmem:[#allocation2 + $0x10] sm:$0xf] %v559
  %592 = vst [vmem:[#allocation2 + $0x14] sm:$0xf] %v560
  %593 = vst [vmem:[#allocation2 + $0x18] sm:$0xf] %v561
  %594 = vst [vmem:[#allocation2 + $0x1c] sm:$0xf] %v562
  %595 = vst [vmem:[#allocation2 + $0x20] sm:$0xf] %v563
  %596 = vst [vmem:[#allocation2 + $0x24] sm:$0xf] %v564
  %597 = vst [vmem:[#allocation2 + $0x28] sm:$0xf] %v565
  %598 = vst [vmem:[#allocation2 + $0x2c] sm:$0xf] %v566
  %599 = vst [vmem:[#allocation2 + $0x30] sm:$0xf] %v567
  %600 = vst [vmem:[#allocation2 + $0x34] sm:$0xf] %v568
  %601 = vst [vmem:[#allocation2 + $0x38] sm:$0xf] %v569
  %602 = vst [vmem:[#allocation2 + $0x3c] sm:$0xf] %v570
  %v603 = vld [vmem:[%s0] sm:$0xf]
  %v604 = vld [vmem:[%s0 + $0x4] sm:$0xf]
  %v605 = vld [vmem:[%s0 + $0x8] sm:$0xf]
  %v606 = vld [vmem:[%s0 + $0xc] sm:$0xf]
  %v607 = vld [vmem:[%s0 + $0x10] sm:$0xf]
  %v608 = vld [vmem:[%s0 + $0x14] sm:$0xf]
  %v609 = vld [vmem:[%s0 + $0x18] sm:$0xf]
  %v610 = vld [vmem:[%s0 + $0x1c] sm:$0xf]
  %v611 = vld [vmem:[%s0 + $0x20] sm:$0xf]
  %v612 = vld [vmem:[%s0 + $0x24] sm:$0xf]
  %v613 = vld [vmem:[%s0 + $0x28] sm:$0xf]
  %v614 = vld [vmem:[%s0 + $0x2c] sm:$0xf]
  %v615 = vld [vmem:[%s0 + $0x30] sm:$0xf]
  %v616 = vld [vmem:[%s0 + $0x34] sm:$0xf]
  %v617 = vld [vmem:[%s0 + $0x38] sm:$0xf]
  %v618 = vld [vmem:[%s0 + $0x3c] sm:$0xf]
  %v619 = vld [vmem:[#allocation2] sm:$0xf]
  %v620 = vld [vmem:[#allocation2 + $0x4] sm:$0xf]
  %v621 = vld [vmem:[#allocation2 + $0x8] sm:$0xf]
  %v622 = vld [vmem:[#allocation2 + $0xc] sm:$0xf]
  %v623 = vld [vmem:[#allocation2 + $0x10] sm:$0xf]
  %v624 = vld [vmem:[#allocation2 + $0x14] sm:$0xf]
  %v625 = vld [vmem:[#allocation2 + $0x18] sm:$0xf]
  %v626 = vld [vmem:[#allocation2 + $0x1c] sm:$0xf]
  %v627 = vld [vmem:[#allocation2 + $0x20] sm:$0xf]
  %v628 = vld [vmem:[#allocation2 + $0x24] sm:$0xf]
  %v629 = vld [vmem:[#allocation2 + $0x28] sm:$0xf]
  %v630 = vld [vmem:[#allocation2 + $0x2c] sm:$0xf]
  %v631 = vld [vmem:[#allocation2 + $0x30] sm:$0xf]
  %v632 = vld [vmem:[#allocation2 + $0x34] sm:$0xf]
  %v633 = vld [vmem:[#allocation2 + $0x38] sm:$0xf]
  %v634 = vld [vmem:[#allocation2 + $0x3c] sm:$0xf]
  %v635 = vld [vmem:[%s3] sm:$0x1]
  %v637 = vlaneseq
  %v638 = vshrl.u32 %v637, 7
  %v639 = vsub.s32 0, %v638
  %v640 = vrot.slane %v635, %v639
  %v658 = vunpack.c.l.b16 %v603
  %v659 = vunpack.c.l.b16 %v604
  %v660 = vunpack.c.l.b16 %v605
  %v661 = vunpack.c.l.b16 %v606
  %v662 = vunpack.c.l.b16 %v607
  %v663 = vunpack.c.l.b16 %v608
  %v664 = vunpack.c.l.b16 %v609
  %v665 = vunpack.c.l.b16 %v610
  %v666 = vunpack.c.l.b16 %v611
  %v667 = vunpack.c.l.b16 %v612
  %v668 = vunpack.c.l.b16 %v613
  %v669 = vunpack.c.l.b16 %v614
  %v670 = vunpack.c.l.b16 %v615
  %v671 = vunpack.c.l.b16 %v616
  %v672 = vunpack.c.l.b16 %v617
  %v673 = vunpack.c.l.b16 %v618
  %v674 = vpack.c.b16 %v659, %v658
  %v675 = vpack.c.b16 %v661, %v660
  %v676 = vpack.c.b16 %v663, %v662
  %v677 = vpack.c.b16 %v665, %v664
  %v678 = vpack.c.b16 %v667, %v666
  %v679 = vpack.c.b16 %v669, %v668
  %v680 = vpack.c.b16 %v671, %v670
  %v681 = vpack.c.b16 %v673, %v672
  %v706 = vunpack.c.l.b16 %v619
  %v707 = vunpack.c.l.b16 %v620
  %v708 = vunpack.c.l.b16 %v621
  %v709 = vunpack.c.l.b16 %v622
  %v710 = vunpack.c.l.b16 %v623
  %v711 = vunpack.c.l.b16 %v624
  %v712 = vunpack.c.l.b16 %v625
  %v713 = vunpack.c.l.b16 %v626
  %v714 = vunpack.c.l.b16 %v627
  %v715 = vunpack.c.l.b16 %v628
  %v716 = vunpack.c.l.b16 %v629
  %v717 = vunpack.c.l.b16 %v630
  %v718 = vunpack.c.l.b16 %v631
  %v719 = vunpack.c.l.b16 %v632
  %v720 = vunpack.c.l.b16 %v633
  %v721 = vunpack.c.l.b16 %v634
  %v722 = vpack.c.b16 %v707, %v706
  %v723 = vpack.c.b16 %v709, %v708
  %v724 = vpack.c.b16 %v711, %v710
  %v725 = vpack.c.b16 %v713, %v712
  %v726 = vpack.c.b16 %v715, %v714
  %v727 = vpack.c.b16 %v717, %v716
  %v728 = vpack.c.b16 %v719, %v718
  %v729 = vpack.c.b16 %v721, %v720
  %738 = vmatprep.subr.bf16.mxu0 0
  %739 = vmatpush1.bf16.msra.mxu0 %v729
  %740 = vmatprep.subr.bf16.mxu0 0
  %741 = vmatpush1.bf16.msra.mxu0 %v728
  %742 = vmatprep.subr.bf16.mxu0 0
  %743 = vmatpush1.bf16.msra.mxu0 %v727
  %744 = vmatprep.subr.bf16.mxu0 0
  %745 = vmatpush1.bf16.msra.mxu0 %v726
  %746 = vmatprep.subr.bf16.mxu0 0
  %747 = vmatpush1.bf16.msra.mxu0 %v725
  %748 = vmatprep.subr.bf16.mxu0 0
  %749 = vmatpush1.bf16.msra.mxu0 %v724
  %750 = vmatprep.subr.bf16.mxu0 0
  %751 = vmatpush1.bf16.msra.mxu0 %v723
  %752 = vmatprep.subr.bf16.mxu0 0
  %753 = vmatpush1.bf16.msra.mxu0 %v722
  %754 = vmatprep.subr.bf16.mxu0 0
  %755 = vmatpush2.bf16.msra.mxu0 0
  %756 = vmatprep.subr.bf16.mxu0 0
  %757 = vmatpush2.bf16.msra.mxu0 0
  %758 = vmatprep.subr.bf16.mxu0 0
  %759 = vmatpush2.bf16.msra.mxu0 0
  %760 = vmatprep.subr.bf16.mxu0 0
  %761 = vmatpush2.bf16.msra.mxu0 0
  %762 = vmatprep.subr.bf16.mxu0 0
  %763 = vmatpush2.bf16.msra.mxu0 0
  %764 = vmatprep.subr.bf16.mxu0 0
  %765 = vmatpush2.bf16.msra.mxu0 0
  %766 = vmatprep.subr.bf16.mxu0 0
  %767 = vmatpush2.bf16.msra.mxu0 0
  %768 = vmatprep.subr.bf16.mxu0 0
  %769 = vmatpush2.bf16.msra.mxu0 0
  %770 = vmatprep.mubr.bf16.mxu0 0
  %771 = vmatmul.mubr.bf16.gmra.mxu0 %v674
  %v772 = vpop.f32.mrf.mxu0
  %v773 = vadd.f32 %v640, %v772
  %v774 = vpop.f32.mrf.mxu0
  %v775 = vpop.f32.mrf.mxu0
  %v776 = vadd.f32 %v640, %v775
  %v777 = vpop.f32.mrf.mxu0
  %778 = vmatprep.mubr.bf16.mxu0 0
  %779 = vmatmul.mubr.bf16.gmra.mxu0 %v675
  %v780 = vpop.f32.mrf.mxu0
  %v781 = vadd.f32 %v640, %v780
  %v782 = vpop.f32.mrf.mxu0
  %v783 = vpop.f32.mrf.mxu0
  %v784 = vadd.f32 %v640, %v783
  %v785 = vpop.f32.mrf.mxu0
  %786 = vmatprep.mubr.bf16.mxu0 0
  %787 = vmatmul.mubr.bf16.gmra.mxu0 %v676
  %v788 = vpop.f32.mrf.mxu0
  %v789 = vadd.f32 %v640, %v788
  %v790 = vpop.f32.mrf.mxu0
  %v791 = vpop.f32.mrf.mxu0
  %v792 = vadd.f32 %v640, %v791
  %v793 = vpop.f32.mrf.mxu0
  %794 = vmatprep.mubr.bf16.mxu0 0
  %795 = vmatmul.mubr.bf16.gmra.mxu0 %v677
  %v796 = vpop.f32.mrf.mxu0
  %v797 = vadd.f32 %v640, %v796
  %v798 = vpop.f32.mrf.mxu0
  %v799 = vpop.f32.mrf.mxu0
  %v800 = vadd.f32 %v640, %v799
  %v801 = vpop.f32.mrf.mxu0
  %802 = vmatprep.mubr.bf16.mxu0 0
  %803 = vmatmul.mubr.bf16.gmra.mxu0 %v678
  %v804 = vpop.f32.mrf.mxu0
  %v805 = vadd.f32 %v640, %v804
  %v806 = vpop.f32.mrf.mxu0
  %v807 = vpop.f32.mrf.mxu0
  %v808 = vadd.f32 %v640, %v807
  %v809 = vpop.f32.mrf.mxu0
  %810 = vmatprep.mubr.bf16.mxu0 0
  %811 = vmatmul.mubr.bf16.gmra.mxu0 %v679
  %v812 = vpop.f32.mrf.mxu0
  %v813 = vadd.f32 %v640, %v812
  %v814 = vpop.f32.mrf.mxu0
  %v815 = vpop.f32.mrf.mxu0
  %v816 = vadd.f32 %v640, %v815
  %v817 = vpop.f32.mrf.mxu0
  %818 = vmatprep.mubr.bf16.mxu0 0
  %819 = vmatmul.mubr.bf16.gmra.mxu0 %v680
  %v820 = vpop.f32.mrf.mxu0
  %v821 = vadd.f32 %v640, %v820
  %v822 = vpop.f32.mrf.mxu0
  %v823 = vpop.f32.mrf.mxu0
  %v824 = vadd.f32 %v640, %v823
  %v825 = vpop.f32.mrf.mxu0
  %826 = vmatprep.mubr.bf16.mxu0 0
  %827 = vmatmul.mubr.bf16.gmra.mxu0 %v681
  %v828 = vpop.f32.mrf.mxu0
  %v829 = vadd.f32 %v640, %v828
  %v830 = vpop.f32.mrf.mxu0
  %v831 = vpop.f32.mrf.mxu0
  %v832 = vadd.f32 %v640, %v831
  %v833 = vpop.f32.mrf.mxu0
  %834 = vdwg.mxu0
  %v835 = vmax.f32 %v773, 0.0
  %v836 = vmax.f32 %v776, 0.0
  %v837 = vmax.f32 %v781, 0.0
  %v838 = vmax.f32 %v784, 0.0
  %v839 = vmax.f32 %v789, 0.0
  %v840 = vmax.f32 %v792, 0.0
  %v841 = vmax.f32 %v797, 0.0
  %v842 = vmax.f32 %v800, 0.0
  %v843 = vmax.f32 %v805, 0.0
  %v844 = vmax.f32 %v808, 0.0
  %v845 = vmax.f32 %v813, 0.0
  %v846 = vmax.f32 %v816, 0.0
  %v847 = vmax.f32 %v821, 0.0
  %v848 = vmax.f32 %v824, 0.0
  %v849 = vmax.f32 %v829, 0.0
  %v850 = vmax.f32 %v832, 0.0
  %v851 = vpack.c.bf16 %v836, %v835
  %v852 = vpack.c.bf16 %v838, %v837
  %v853 = vpack.c.bf16 %v840, %v839
  %v854 = vpack.c.bf16 %v842, %v841
  %v855 = vpack.c.bf16 %v844, %v843
  %v856 = vpack.c.bf16 %v846, %v845
  %v857 = vpack.c.bf16 %v848, %v847
  %v858 = vpack.c.bf16 %v850, %v849
  %v859 = vld [vmem:[%s4] sm:$0xf]
  %v860 = vld [vmem:[%s4 + $0x4] sm:$0xf]
  %v861 = vld [vmem:[%s4 + $0x8] sm:$0xf]
  %v862 = vld [vmem:[%s4 + $0xc] sm:$0xf]
  %v863 = vld [vmem:[%s4 + $0x10] sm:$0xf]
  %v864 = vld [vmem:[%s4 + $0x14] sm:$0xf]
  %v865 = vld [vmem:[%s4 + $0x18] sm:$0xf]
  %v866 = vld [vmem:[%s4 + $0x1c] sm:$0xf]
  %v867 = vld [vmem:[%s4 + $0x20] sm:$0xf]
  %v868 = vld [vmem:[%s4 + $0x24] sm:$0xf]
  %v869 = vld [vmem:[%s4 + $0x28] sm:$0xf]
  %v870 = vld [vmem:[%s4 + $0x2c] sm:$0xf]
  %v871 = vld [vmem:[%s4 + $0x30] sm:$0xf]
  %v872 = vld [vmem:[%s4 + $0x34] sm:$0xf]
  %v873 = vld [vmem:[%s4 + $0x38] sm:$0xf]
  %v874 = vld [vmem:[%s4 + $0x3c] sm:$0xf]
  %v875 = vld [vmem:[%s5] sm:$0x1]
  %v877 = vlaneseq
  %v878 = vshrl.u32 %v877, 7
  %v879 = vsub.s32 0, %v878
  %v880 = vrot.slane %v875, %v879
  %v898 = vunpack.c.l.b16 %v859
  %v899 = vunpack.c.l.b16 %v860
  %v900 = vunpack.c.l.b16 %v861
  %v901 = vunpack.c.l.b16 %v862
  %v902 = vunpack.c.l.b16 %v863
  %v903 = vunpack.c.l.b16 %v864
  %v904 = vunpack.c.l.b16 %v865
  %v905 = vunpack.c.l.b16 %v866
  %v906 = vunpack.c.l.b16 %v867
  %v907 = vunpack.c.l.b16 %v868
  %v908 = vunpack.c.l.b16 %v869
  %v909 = vunpack.c.l.b16 %v870
  %v910 = vunpack.c.l.b16 %v871
  %v911 = vunpack.c.l.b16 %v872
  %v912 = vunpack.c.l.b16 %v873
  %v913 = vunpack.c.l.b16 %v874
  %v914 = vpack.c.b16 %v899, %v898
  %v915 = vpack.c.b16 %v901, %v900
  %v916 = vpack.c.b16 %v903, %v902
  %v917 = vpack.c.b16 %v905, %v904
  %v918 = vpack.c.b16 %v907, %v906
  %v919 = vpack.c.b16 %v909, %v908
  %v920 = vpack.c.b16 %v911, %v910
  %v921 = vpack.c.b16 %v913, %v912
  %930 = vmatprep.subr.bf16.mxu0 0
  %931 = vmatpush1.bf16.msra.mxu0 %v921
  %932 = vmatprep.subr.bf16.mxu0 0
  %933 = vmatpush1.bf16.msra.mxu0 %v920
  %934 = vmatprep.subr.bf16.mxu0 0
  %935 = vmatpush1.bf16.msra.mxu0 %v919
  %936 = vmatprep.subr.bf16.mxu0 0
  %937 = vmatpush1.bf16.msra.mxu0 %v918
  %938 = vmatprep.subr.bf16.mxu0 0
  %939 = vmatpush1.bf16.msra.mxu0 %v917
  %940 = vmatprep.subr.bf16.mxu0 0
  %941 = vmatpush1.bf16.msra.mxu0 %v916
  %942 = vmatprep.subr.bf16.mxu0 0
  %943 = vmatpush1.bf16.msra.mxu0 %v915
  %944 = vmatprep.subr.bf16.mxu0 0
  %945 = vmatpush1.bf16.msra.mxu0 %v914
  %946 = vmatprep.subr.bf16.mxu0 0
  %947 = vmatpush2.bf16.msra.mxu0 0
  %948 = vmatprep.subr.bf16.mxu0 0
  %949 = vmatpush2.bf16.msra.mxu0 0
  %950 = vmatprep.subr.bf16.mxu0 0
  %951 = vmatpush2.bf16.msra.mxu0 0
  %952 = vmatprep.subr.bf16.mxu0 0
  %953 = vmatpush2.bf16.msra.mxu0 0
  %954 = vmatprep.subr.bf16.mxu0 0
  %955 = vmatpush2.bf16.msra.mxu0 0
  %956 = vmatprep.subr.bf16.mxu0 0
  %957 = vmatpush2.bf16.msra.mxu0 0
  %958 = vmatprep.subr.bf16.mxu0 0
  %959 = vmatpush2.bf16.msra.mxu0 0
  %960 = vmatprep.subr.bf16.mxu0 0
  %961 = vmatpush2.bf16.msra.mxu0 0
  %962 = vmatprep.mubr.bf16.mxu0 0
  %963 = vmatmul.mubr.bf16.gmra.mxu0 %v851
  %v964 = vpop.f32.mrf.mxu0
  %v965 = vadd.f32 %v880, %v964
  %v966 = vpop.f32.mrf.mxu0
  %v967 = vpop.f32.mrf.mxu0
  %v968 = vadd.f32 %v880, %v967
  %v969 = vpop.f32.mrf.mxu0
  %970 = vmatprep.mubr.bf16.mxu0 0
  %971 = vmatmul.mubr.bf16.gmra.mxu0 %v852
  %v972 = vpop.f32.mrf.mxu0
  %v973 = vadd.f32 %v880, %v972
  %v974 = vpop.f32.mrf.mxu0
  %v975 = vpop.f32.mrf.mxu0
  %v976 = vadd.f32 %v880, %v975
  %v977 = vpop.f32.mrf.mxu0
  %978 = vmatprep.mubr.bf16.mxu0 0
  %979 = vmatmul.mubr.bf16.gmra.mxu0 %v853
  %v980 = vpop.f32.mrf.mxu0
  %v981 = vadd.f32 %v880, %v980
  %v982 = vpop.f32.mrf.mxu0
  %v983 = vpop.f32.mrf.mxu0
  %v984 = vadd.f32 %v880, %v983
  %v985 = vpop.f32.mrf.mxu0
  %986 = vmatprep.mubr.bf16.mxu0 0
  %987 = vmatmul.mubr.bf16.gmra.mxu0 %v854
  %v988 = vpop.f32.mrf.mxu0
  %v989 = vadd.f32 %v880, %v988
  %v990 = vpop.f32.mrf.mxu0
  %v991 = vpop.f32.mrf.mxu0
  %v992 = vadd.f32 %v880, %v991
  %v993 = vpop.f32.mrf.mxu0
  %994 = vmatprep.mubr.bf16.mxu0 0
  %995 = vmatmul.mubr.bf16.gmra.mxu0 %v855
  %v996 = vpop.f32.mrf.mxu0
  %v997 = vadd.f32 %v880, %v996
  %v998 = vpop.f32.mrf.mxu0
  %v999 = vpop.f32.mrf.mxu0
  %v1000 = vadd.f32 %v880, %v999
  %v1001 = vpop.f32.mrf.mxu0
  %1002 = vmatprep.mubr.bf16.mxu0 0
  %1003 = vmatmul.mubr.bf16.gmra.mxu0 %v856
  %v1004 = vpop.f32.mrf.mxu0
  %v1005 = vadd.f32 %v880, %v1004
  %v1006 = vpop.f32.mrf.mxu0
  %v1007 = vpop.f32.mrf.mxu0
  %v1008 = vadd.f32 %v880, %v1007
  %v1009 = vpop.f32.mrf.mxu0
  %1010 = vmatprep.mubr.bf16.mxu0 0
  %1011 = vmatmul.mubr.bf16.gmra.mxu0 %v857
  %v1012 = vpop.f32.mrf.mxu0
  %v1013 = vadd.f32 %v880, %v1012
  %v1014 = vpop.f32.mrf.mxu0
  %v1015 = vpop.f32.mrf.mxu0
  %v1016 = vadd.f32 %v880, %v1015
  %v1017 = vpop.f32.mrf.mxu0
  %1018 = vmatprep.mubr.bf16.mxu0 0
  %1019 = vmatmul.mubr.bf16.gmra.mxu0 %v858
  %v1020 = vpop.f32.mrf.mxu0
  %v1021 = vadd.f32 %v880, %v1020
  %v1022 = vpop.f32.mrf.mxu0
  %v1023 = vpop.f32.mrf.mxu0
  %v1024 = vadd.f32 %v880, %v1023
  %v1025 = vpop.f32.mrf.mxu0
  %1026 = vdwg.mxu0
  %1027 = vst [vmem:[%s6] sm:$0xff] %v965
  %1028 = vst [vmem:[%s6 + $0x8] sm:$0xff] %v968
  %1029 = vst [vmem:[%s6 + $0x10] sm:$0xff] %v973
  %1030 = vst [vmem:[%s6 + $0x18] sm:$0xff] %v976
  %1031 = vst [vmem:[%s6 + $0x20] sm:$0xff] %v981
  %1032 = vst [vmem:[%s6 + $0x28] sm:$0xff] %v984
  %1033 = vst [vmem:[%s6 + $0x30] sm:$0xff] %v989
  %1034 = vst [vmem:[%s6 + $0x38] sm:$0xff] %v992
  %1035 = vst [vmem:[%s6 + $0x40] sm:$0xff] %v997
  %1036 = vst [vmem:[%s6 + $0x48] sm:$0xff] %v1000
  %1037 = vst [vmem:[%s6 + $0x50] sm:$0xff] %v1005
  %1038 = vst [vmem:[%s6 + $0x58] sm:$0xff] %v1008
  %1039 = vst [vmem:[%s6 + $0x60] sm:$0xff] %v1013
  %1040 = vst [vmem:[%s6 + $0x68] sm:$0xff] %v1016
  %1041 = vst [vmem:[%s6 + $0x70] sm:$0xff] %v1021
  %1042 = vst [vmem:[%s6 + $0x78] sm:$0xff] %v1024
  // Predicated region
  $region26: #{sgc_forward.1} parent=0 // pred_check
    _
  $region27: #{sgc_forward.1} parent=0 // pred_check_branch
    %1044 = sbr.rel (0) target = $region29
  $region28: #{sgc_forward.1} parent=0 // pred_region
    _
  $region29: #{sgc_forward.1} parent=0 // pred_fallthru
    _
  // Predicated region
  $region30: #{sgc_forward.1} parent=0 // pred_check
    _
  $region31: #{sgc_forward.1} parent=0 // pred_check_branch
    %1046 = sbr.rel (0) target = $region33
  $region32: #{sgc_forward.1} parent=0 // pred_region
    _
  $region33: #{sgc_forward.1} parent=0 // pred_fallthru
    _

</llo_original>
